<compile_context>
chip_gen: v6e
topology: v6e:2x2x1
jax: 0.10.0
libtpu: 0.0.40
codegen_flags: <defaults>
</compile_context>

<pallas_src>
import functools

import jax
import jax.numpy as jnp
from jax.experimental import pallas as pl
from jax.experimental.pallas import tpu as pltpu

EPS = 1e-5


def _round_up(n, m):
    return ((n + m - 1) // m) * m


def generator_f_kernel(x_ref, w1_ref, p1_ref, w2_ref, p2_ref, o_ref, *, inv_b):
    """One output-feature block: full layer-1 + one column block of layer-2."""
    # ---- Linear(feature -> hidden_padded), bf16 operands, f32 accumulate ----
    h = jnp.dot(x_ref[...], w1_ref[...], preferred_element_type=jnp.float32)

    # ---- BatchNorm1d (training mode), single-pass stats + fused affine ----
    mu1 = jnp.sum(h, axis=0, keepdims=True) * inv_b
    var1 = jnp.sum(h * h, axis=0, keepdims=True) * inv_b - mu1 * mu1
    scale1 = p1_ref[0:1, :] * jax.lax.rsqrt(var1 + EPS)     # gamma * rsqrt
    shift1 = p1_ref[1:2, :] - mu1 * scale1                  # beta - mu*scale
    h = jnp.maximum(h * scale1 + shift1, 0.0)               # BN + ReLU

    # ---- Linear(hidden_padded -> out_block), bf16 operands ----
    y = jnp.dot(h.astype(jnp.bfloat16), w2_ref[...],
                preferred_element_type=jnp.float32)

    # ---- Final BatchNorm1d (training mode) ----
    mu2 = jnp.sum(y, axis=0, keepdims=True) * inv_b
    var2 = jnp.sum(y * y, axis=0, keepdims=True) * inv_b - mu2 * mu2
    scale2 = p2_ref[0:1, :] * jax.lax.rsqrt(var2 + EPS)
    shift2 = p2_ref[1:2, :] - mu2 * scale2
    o_ref[...] = (y * scale2 + shift2).astype(o_ref.dtype)


def generator_f_forward(x, params):
    """x: (B, feature_size) f32.  params: dict from init_params (f32)."""
    w1, g1, be1 = params["w1"], params["g1"], params["be1"]
    w2, g2, be2 = params["w2"], params["g2"], params["be2"]

    B, F = x.shape
    H, OUT = w2.shape

    # Pad hidden to a lane-dense multiple of 128 (zeros are exact no-ops).
    HP = max(128, _round_up(H, 128))
    w1p = jnp.zeros((F, HP), jnp.bfloat16).at[:, :H].set(w1.astype(jnp.bfloat16))
    w2p = jnp.zeros((HP, OUT), jnp.bfloat16).at[:H, :].set(w2.astype(jnp.bfloat16))

    # Pack per-feature BN params: row 0 = gamma, row 1 = beta.
    p1 = jnp.zeros((2, HP), jnp.float32).at[0, :H].set(g1).at[1, :H].set(be1)
    p2 = jnp.stack([g2, be2], axis=0).astype(jnp.float32)   # (2, OUT)

    xb = x.astype(jnp.bfloat16)

    # Output-feature blocks of 128 lanes (single full block if not divisible).
    n_blk = 128 if OUT % 128 == 0 else OUT
    grid = (OUT // n_blk,)

    kernel = functools.partial(generator_f_kernel, inv_b=1.0 / B)
    return pl.pallas_call(
        kernel,
        out_shape=jax.ShapeDtypeStruct((B, OUT), jnp.float32),
        grid=grid,
        in_specs=[
            pl.BlockSpec((B, F), lambda j: (0, 0)),       # x        (resident)
            pl.BlockSpec((F, HP), lambda j: (0, 0)),      # w1       (resident)
            pl.BlockSpec((2, HP), lambda j: (0, 0)),      # gamma1/beta1 slab
            pl.BlockSpec((HP, n_blk), lambda j: (0, j)),  # w2 column block
            pl.BlockSpec((2, n_blk), lambda j: (0, j)),   # gamma2/beta2 slab
        ],
        out_specs=pl.BlockSpec((B, n_blk), lambda j: (0, j)),
        compiler_params=pltpu.CompilerParams(
            dimension_semantics=("parallel",)),
    )(xb, w1p, p1, w2p, p2)


def init_params(key, feature_size, hidden, out_size):
    """PyTorch-default init: Linear U(-k,k), k=1/sqrt(fan_in); BN gamma=1, beta=0.
    Linear weights stored transposed as (in, out).  Biases are kept only for the
    full-precision reference (they cancel exactly under training-mode BN)."""
    k1, k2, k3, k4 = jax.random.split(key, 4)
    bnd1 = 1.0 / jnp.sqrt(feature_size)
    bnd2 = 1.0 / jnp.sqrt(hidden)
    return {
        "w1": jax.random.uniform(k1, (feature_size, hidden), jnp.float32, -bnd1, bnd1),
        "b1": jax.random.uniform(k2, (hidden,), jnp.float32, -bnd1, bnd1),
        "g1": jnp.ones((hidden,), jnp.float32),
        "be1": jnp.zeros((hidden,), jnp.float32),
        "w2": jax.random.uniform(k3, (hidden, out_size), jnp.float32, -bnd2, bnd2),
        "b2": jax.random.uniform(k4, (out_size,), jnp.float32, -bnd2, bnd2),
        "g2": jnp.ones((out_size,), jnp.float32),
        "be2": jnp.zeros((out_size,), jnp.float32),
    }


def _bn_fused(h, g, b, inv_b):
    mu = jnp.sum(h, axis=0, keepdims=True) * inv_b
    var = jnp.sum(h * h, axis=0, keepdims=True) * inv_b - mu * mu
    scale = g * jax.lax.rsqrt(var + EPS)
    shift = b - mu * scale
    return h * scale + shift


def reference_bf16(x, p):
    """Pure-JAX reference with the same bf16-operand / f32-accumulate math as
    the kernel (tight-tolerance check)."""
    inv_b = 1.0 / x.shape[0]
    h = jnp.dot(x.astype(jnp.bfloat16), p["w1"].astype(jnp.bfloat16),
                preferred_element_type=jnp.float32)
    h = jnp.maximum(_bn_fused(h, p["g1"], p["be1"], inv_b), 0.0)
    y = jnp.dot(h.astype(jnp.bfloat16), p["w2"].astype(jnp.bfloat16),
                preferred_element_type=jnp.float32)
    return _bn_fused(y, p["g2"], p["be2"], inv_b)


def reference_f32(x, p):
    """Exact PyTorch-semantics reference (f32, with Linear biases, two-pass var)."""
    def bn(h, g, b):
        mu = jnp.mean(h, axis=0, keepdims=True)
        var = jnp.mean((h - mu) ** 2, axis=0, keepdims=True)
        return (h - mu) / jnp.sqrt(var + EPS) * g + b

    h = x @ p["w1"] + p["b1"]
    h = jnp.maximum(bn(h, p["g1"], p["be1"]), 0.0)
    y = h @ p["w2"] + p["b2"]
    return bn(y, p["g2"], p["be2"])


if __name__ == "__main__":
    # Generator_f(feature_size=128, rep_num=1, div=2, out_size=128, use_bn=True)
    B, FEATURE_SIZE, DIV, OUT_SIZE = 8, 128, 2, 128
    HIDDEN = FEATURE_SIZE // DIV

    key = jax.random.PRNGKey(0)
    kx, kp = jax.random.split(key)
    x = jax.random.normal(kx, (B, FEATURE_SIZE), jnp.float32)
    params = init_params(kp, FEATURE_SIZE, HIDDEN, OUT_SIZE)

    out = jax.block_until_ready(generator_f_forward(x, params))
    assert out.shape == (B, OUT_SIZE), out.shape

    # Tight check against the bf16-consistent reference.
    ref_b = reference_bf16(x, params)
    err_b = float(jnp.max(jnp.abs(out - ref_b)))
    assert err_b < 2e-3, err_b

    # Informational: deviation from full-f32 PyTorch-semantics forward
    # (difference is only bf16 rounding of the MXU operands).
    ref_f = reference_f32(x, params)
    err_f = float(jnp.max(jnp.abs(out - ref_f)))
    print(f"max |pallas - bf16_ref| = {err_b:.2e}, max |pallas - f32_ref| = {err_f:.2e}")

    print("KERNEL_OK")
</pallas_src>

<mosaic_0001>
module attributes {stable_mosaic.version = 11 : i64} {
  func.func @generator_f_kernel(%arg0: i32, %arg1: memref<8x128xbf16, #tpu.memory_space<vmem>>, %arg2: memref<128x128xbf16, #tpu.memory_space<vmem>>, %arg3: memref<2x128xf32, #tpu.memory_space<vmem>>, %arg4: memref<128x128xbf16, #tpu.memory_space<vmem>>, %arg5: memref<2x128xf32, #tpu.memory_space<vmem>>, %arg6: memref<8x128xf32, #tpu.memory_space<vmem>>) attributes {dimension_semantics = [#tpu.dimension_semantics<parallel>], iteration_bounds = array<i64: 1>, scalar_prefetch = 0 : i64, scratch_operands = 0 : i64, tpu.core_type = #tpu.core_type<tc>, window_params = [{pipeline_mode = #tpu.pipeline_mode<synchronous>, transform_indices = @transform_0, window_bounds = array<i64: 8, 128>}, {pipeline_mode = #tpu.pipeline_mode<synchronous>, transform_indices = @transform_1, window_bounds = array<i64: 128, 128>}, {pipeline_mode = #tpu.pipeline_mode<synchronous>, transform_indices = @transform_2, window_bounds = array<i64: 2, 128>}, {transform_indices = @transform_3, window_bounds = array<i64: 128, 128>}, {transform_indices = @transform_4, window_bounds = array<i64: 2, 128>}, {transform_indices = @transform_5, window_bounds = array<i64: 8, 128>}]} {
    %c0 = arith.constant 0 : index
    %c0_0 = arith.constant 0 : index
    %0 = vector.load %arg1[%c0, %c0_0] : memref<8x128xbf16, #tpu.memory_space<vmem>>, vector<8x128xbf16>
    %c0_1 = arith.constant 0 : index
    %c0_2 = arith.constant 0 : index
    %1 = vector.load %arg2[%c0_1, %c0_2] : memref<128x128xbf16, #tpu.memory_space<vmem>>, vector<128x128xbf16>
    %cst = arith.constant dense<0.000000e+00> : vector<8x128xf32>
    %2 = tpu.matmul %0, %1, %cst {dimension_numbers = #tpu.dot_dimension_numbers<[1], [0], [0], [1], [0, 0, 1, 1], [], []>} : vector<8x128xbf16>, vector<128x128xbf16>, vector<8x128xf32> -> vector<8x128xf32>
    %cst_3 = arith.constant dense<0.000000e+00> : vector<128xf32>
    %3 = vector.multi_reduction <add>, %2, %cst_3 [0] : vector<8x128xf32> to vector<128xf32>
    %4 = vector.shape_cast %3 : vector<128xf32> to vector<1x128xf32>
    %cst_4 = arith.constant 1.250000e-01 : f32
    %5 = vector.broadcast %cst_4 : f32 to vector<1x128xf32>
    %6 = arith.mulf %4, %5 : vector<1x128xf32>
    %7 = arith.mulf %2, %2 : vector<8x128xf32>
    %cst_5 = arith.constant dense<0.000000e+00> : vector<128xf32>
    %8 = vector.multi_reduction <add>, %7, %cst_5 [0] : vector<8x128xf32> to vector<128xf32>
    %9 = vector.shape_cast %8 : vector<128xf32> to vector<1x128xf32>
    %cst_6 = arith.constant 1.250000e-01 : f32
    %10 = vector.broadcast %cst_6 : f32 to vector<1x128xf32>
    %11 = arith.mulf %9, %10 : vector<1x128xf32>
    %12 = arith.mulf %6, %6 : vector<1x128xf32>
    %13 = arith.subf %11, %12 : vector<1x128xf32>
    %c0_7 = arith.constant 0 : index
    %c0_8 = arith.constant 0 : index
    %14 = vector.load %arg3[%c0_7, %c0_8] : memref<2x128xf32, #tpu.memory_space<vmem>>, vector<1x128xf32>
    %cst_9 = arith.constant 9.99999974E-6 : f32
    %15 = vector.broadcast %cst_9 : f32 to vector<1x128xf32>
    %16 = arith.addf %13, %15 : vector<1x128xf32>
    %17 = math.rsqrt %16 : vector<1x128xf32>
    %18 = arith.mulf %14, %17 : vector<1x128xf32>
    %c1 = arith.constant 1 : index
    %c0_10 = arith.constant 0 : index
    %19 = vector.load %arg3[%c1, %c0_10] : memref<2x128xf32, #tpu.memory_space<vmem>>, vector<1x128xf32>
    %20 = arith.mulf %6, %18 : vector<1x128xf32>
    %21 = arith.subf %19, %20 : vector<1x128xf32>
    %22 = vector.broadcast %18 : vector<1x128xf32> to vector<8x128xf32>
    %23 = arith.mulf %2, %22 : vector<8x128xf32>
    %24 = vector.broadcast %21 : vector<1x128xf32> to vector<8x128xf32>
    %25 = arith.addf %23, %24 : vector<8x128xf32>
    %cst_11 = arith.constant 0.000000e+00 : f32
    %26 = vector.broadcast %cst_11 : f32 to vector<8x128xf32>
    %27 = arith.maximumf %25, %26 : vector<8x128xf32>
    %28 = arith.truncf %27 : vector<8x128xf32> to vector<8x128xbf16>
    %c0_12 = arith.constant 0 : index
    %c0_13 = arith.constant 0 : index
    %29 = vector.load %arg4[%c0_12, %c0_13] : memref<128x128xbf16, #tpu.memory_space<vmem>>, vector<128x128xbf16>
    %cst_14 = arith.constant dense<0.000000e+00> : vector<8x128xf32>
    %30 = tpu.matmul %28, %29, %cst_14 {dimension_numbers = #tpu.dot_dimension_numbers<[1], [0], [0], [1], [0, 0, 1, 1], [], []>} : vector<8x128xbf16>, vector<128x128xbf16>, vector<8x128xf32> -> vector<8x128xf32>
    %cst_15 = arith.constant dense<0.000000e+00> : vector<128xf32>
    %31 = vector.multi_reduction <add>, %30, %cst_15 [0] : vector<8x128xf32> to vector<128xf32>
    %32 = vector.shape_cast %31 : vector<128xf32> to vector<1x128xf32>
    %cst_16 = arith.constant 1.250000e-01 : f32
    %33 = vector.broadcast %cst_16 : f32 to vector<1x128xf32>
    %34 = arith.mulf %32, %33 : vector<1x128xf32>
    %35 = arith.mulf %30, %30 : vector<8x128xf32>
    %cst_17 = arith.constant dense<0.000000e+00> : vector<128xf32>
    %36 = vector.multi_reduction <add>, %35, %cst_17 [0] : vector<8x128xf32> to vector<128xf32>
    %37 = vector.shape_cast %36 : vector<128xf32> to vector<1x128xf32>
    %cst_18 = arith.constant 1.250000e-01 : f32
    %38 = vector.broadcast %cst_18 : f32 to vector<1x128xf32>
    %39 = arith.mulf %37, %38 : vector<1x128xf32>
    %40 = arith.mulf %34, %34 : vector<1x128xf32>
    %41 = arith.subf %39, %40 : vector<1x128xf32>
    %c0_19 = arith.constant 0 : index
    %c0_20 = arith.constant 0 : index
    %42 = vector.load %arg5[%c0_19, %c0_20] : memref<2x128xf32, #tpu.memory_space<vmem>>, vector<1x128xf32>
    %cst_21 = arith.constant 9.99999974E-6 : f32
    %43 = vector.broadcast %cst_21 : f32 to vector<1x128xf32>
    %44 = arith.addf %41, %43 : vector<1x128xf32>
    %45 = math.rsqrt %44 : vector<1x128xf32>
    %46 = arith.mulf %42, %45 : vector<1x128xf32>
    %c1_22 = arith.constant 1 : index
    %c0_23 = arith.constant 0 : index
    %47 = vector.load %arg5[%c1_22, %c0_23] : memref<2x128xf32, #tpu.memory_space<vmem>>, vector<1x128xf32>
    %48 = arith.mulf %34, %46 : vector<1x128xf32>
    %49 = arith.subf %47, %48 : vector<1x128xf32>
    %50 = vector.broadcast %46 : vector<1x128xf32> to vector<8x128xf32>
    %51 = arith.mulf %30, %50 : vector<8x128xf32>
    %52 = vector.broadcast %49 : vector<1x128xf32> to vector<8x128xf32>
    %53 = arith.addf %51, %52 : vector<8x128xf32>
    %c0_24 = arith.constant 0 : index
    %c0_25 = arith.constant 0 : index
    %54 = vector.load %arg6[%c0_24, %c0_25] : memref<8x128xf32, #tpu.memory_space<vmem>>, vector<8x128xf32>
    tpu.vector_store %arg6[%c0_24, %c0_25], %53 {strides = array<i32>} : memref<8x128xf32, #tpu.memory_space<vmem>>, vector<8x128xf32>,
    return
  }
  func.func @transform_0(%arg0: i32) -> (i32, i32) {
    %c0_i32 = arith.constant 0 : i32
    %c0_i32_0 = arith.constant 0 : i32
    %c0_i32_1 = arith.constant 0 : i32
    return %c0_i32, %c0_i32_0 : i32, i32
  }
  func.func @transform_1(%arg0: i32) -> (i32, i32) {
    %c0_i32 = arith.constant 0 : i32
    %c0_i32_0 = arith.constant 0 : i32
    %c0_i32_1 = arith.constant 0 : i32
    return %c0_i32, %c0_i32_0 : i32, i32
  }
  func.func @transform_2(%arg0: i32) -> (i32, i32) {
    %c0_i32 = arith.constant 0 : i32
    %c0_i32_0 = arith.constant 0 : i32
    %c0_i32_1 = arith.constant 0 : i32
    return %c0_i32, %c0_i32_0 : i32, i32
  }
  func.func @transform_3(%arg0: i32) -> (i32, i32) {
    %c0_i32 = arith.constant 0 : i32
    %c0_i32_0 = arith.constant 0 : i32
    return %c0_i32, %arg0 : i32, i32
  }
  func.func @transform_4(%arg0: i32) -> (i32, i32) {
    %c0_i32 = arith.constant 0 : i32
    %c0_i32_0 = arith.constant 0 : i32
    return %c0_i32, %arg0 : i32, i32
  }
  func.func @transform_5(%arg0: i32) -> (i32, i32) {
    %c0_i32 = arith.constant 0 : i32
    %c0_i32_0 = arith.constant 0 : i32
    return %c0_i32, %arg0 : i32, i32
  }
}

</mosaic_0001>

<llo_original>
// kernel: tpu_custom_call.1
$region0: #{tpu_custom_call.1}
  #allocation0 [shape = 'u32[]', space=smem, size = 0x4, offset = 0x4, fixed_abs, tag = 'smem constant byte address 0x4 - core index']
  #allocation1 [shape = 'u32[144,128]{1,0:T(1,128)}', space=vmem, size = 0x12000, scoped, tag = 'internal scratch']
  %s0 = inlined_call_operand.hbm [shape: bf16[8,128], index: 0, kind: input, shape index: {}]
  %s1 = inlined_call_operand.hbm [shape: bf16[128,128], index: 1, kind: input, shape index: {}]
  %s2 = inlined_call_operand.vmem [shape: f32[2,128], index: 2, kind: input, shape index: {}]
  %s3 = inlined_call_operand.hbm [shape: bf16[128,128], index: 3, kind: input, shape index: {}]
  %s4 = inlined_call_operand.vmem [shape: f32[2,128], index: 4, kind: input, shape index: {}]
  %s5 = inlined_call_operand.hbm [shape: f32[8,128], index: 5, kind: output, shape index: {}]
  %s6 = sld [smem:[#allocation0]]
  $region42: #{tpu_custom_call.1} parent=0
    _
  %s8 = ssub.s32 1, %s6
  %s9 = scalar_select 0, %s8, %s6
  $region1: #{tpu_custom_call.1} parent=0
    #allocation2 [shape = 'u8[2048]{0}', space=vmem, size = 0x800, scoped, tag = 'input window, operand 0, single buffered']
    #allocation3 [shape = 's32[1]{0}', space=sflag, size = 0x4, scoped, tag = 'scoped memory for tpu_custom_call.1']
    #allocation4 [shape = 's32[1]{0}', space=sflag, size = 0x4, scoped, tag = 'scoped memory for tpu_custom_call.1']
    #allocation5 [shape = 'u8[32768]{0}', space=vmem, size = 0x8000, scoped, tag = 'input window, operand 1, single buffered']
    #allocation6 [shape = 's32[1]{0}', space=sflag, size = 0x4, scoped, tag = 'scoped memory for tpu_custom_call.1']
    #allocation7 [shape = 'u8[32768]{0}', space=vmem, size = 0x8000, scoped, tag = 'input window, operand 3, single buffered']
    #allocation8 [shape = 'u8[4096]{0}', space=vmem, size = 0x1000, scoped, tag = 'output window, operand 0, single buffered']
    %10 = vsyncpa [#allocation3], 0
    %11 = vsyncpa [#allocation6], 0
    %12 = vsyncpa [#allocation4], 0
    // Predicated region
    $region2: #{tpu_custom_call.1} parent=1 // pred_check
      _
    $region3: #{tpu_custom_call.1} parent=1 // pred_check_branch
      %14 = sbr.rel (0) target = $region5
    $region4: #{tpu_custom_call.1} parent=1 // pred_region
      %s16 = ssub.s32 64, 64
      %17 = vsyncadd [#allocation3], %s16
      %s19 = sshll.u32 [#allocation2], 4
      %s20 = int_to_ptr.vmem [resolvable:$true] %s19
      %22 = dma.hbm_to_vmem [thread:$0]  %s0, 64, %s20, [#allocation3]
    $region5: #{tpu_custom_call.1} parent=1 // pred_fallthru
      _
    // Predicated region
    $region6: #{tpu_custom_call.1} parent=1 // pred_check
      _
    $region7: #{tpu_custom_call.1} parent=1 // pred_check_branch
      %24 = sbr.rel (0) target = $region9
    $region8: #{tpu_custom_call.1} parent=1 // pred_region
      %s26 = ssub.s32 1024, 1024
      %27 = vsyncadd [#allocation6], %s26
      %s28 = sshll.u32 [#allocation5], 4
      %s29 = int_to_ptr.vmem [resolvable:$true] %s28
      %34 = dma.hbm_to_vmem [thread:$0]  %s1, 1024, %s29, [#allocation6], 64, 64, 4
    $region9: #{tpu_custom_call.1} parent=1 // pred_fallthru
      _
    // Predicated region
    $region10: #{tpu_custom_call.1} parent=1 // pred_check
      _
    $region11: #{tpu_custom_call.1} parent=1 // pred_check_branch
      %36 = sbr.rel (0) target = $region13
    $region12: #{tpu_custom_call.1} parent=1 // pred_region
      _
    $region13: #{tpu_custom_call.1} parent=1 // pred_fallthru
      _
    // Predicated region
    $region14: #{tpu_custom_call.1} parent=1 // pred_check
      _
    $region15: #{tpu_custom_call.1} parent=1 // pred_check_branch
      %38 = sbr.rel (0) target = $region17
    $region16: #{tpu_custom_call.1} parent=1 // pred_region
      %s40 = ssub.s32 1024, 1024
      %41 = vsyncadd [#allocation6], %s40
      %s42 = sshll.u32 [#allocation7], 4
      %s43 = int_to_ptr.vmem [resolvable:$true] %s42
      %48 = dma.hbm_to_vmem [thread:$0]  %s3, 1024, %s43, [#allocation6], 64, 64, 4
    $region17: #{tpu_custom_call.1} parent=1 // pred_fallthru
      _
    // Predicated region
    $region18: #{tpu_custom_call.1} parent=1 // pred_check
      _
    $region19: #{tpu_custom_call.1} parent=1 // pred_check_branch
      %50 = sbr.rel (0) target = $region21
    $region20: #{tpu_custom_call.1} parent=1 // pred_region
      _
    $region21: #{tpu_custom_call.1} parent=1 // pred_fallthru
      _
    // Predicated region
    $region22: #{tpu_custom_call.1} parent=1 // pred_check
      _
    $region23: #{tpu_custom_call.1} parent=1 // pred_check_branch
      %52 = sbr.rel (0) target = $region25
    $region24: #{tpu_custom_call.1} parent=1 // pred_region
      %53 = dma.done [#allocation3], 64
    $region25: #{tpu_custom_call.1} parent=1 // pred_fallthru
      _
    // Predicated region
    $region26: #{tpu_custom_call.1} parent=1 // pred_check
      _
    $region27: #{tpu_custom_call.1} parent=1 // pred_check_branch
      %55 = sbr.rel (0) target = $region29
    $region28: #{tpu_custom_call.1} parent=1 // pred_region
      %56 = dma.done [#allocation6], 1024
    $region29: #{tpu_custom_call.1} parent=1 // pred_fallthru
      _
    // Predicated region
    $region30: #{tpu_custom_call.1} parent=1 // pred_check
      _
    $region31: #{tpu_custom_call.1} parent=1 // pred_check_branch
      %58 = sbr.rel (0) target = $region33
    $region32: #{tpu_custom_call.1} parent=1 // pred_region
      %59 = dma.done [#allocation6], 1024
    $region33: #{tpu_custom_call.1} parent=1 // pred_fallthru
      _
    %v61 = vld [vmem:[#allocation2] sm:$0xf]
    %v62 = vld [vmem:[#allocation5] sm:$0xf]
    %v63 = vld [vmem:[#allocation5 + $0x4] sm:$0xf]
    %v64 = vld [vmem:[#allocation5 + $0x8] sm:$0xf]
    %v65 = vld [vmem:[#allocation5 + $0xc] sm:$0xf]
    %v66 = vld [vmem:[#allocation5 + $0x10] sm:$0xf]
    %v67 = vld [vmem:[#allocation5 + $0x14] sm:$0xf]
    %v68 = vld [vmem:[#allocation5 + $0x18] sm:$0xf]
    %v69 = vld [vmem:[#allocation5 + $0x1c] sm:$0xf]
    %v70 = vld [vmem:[#allocation5 + $0x20] sm:$0xf]
    %v71 = vld [vmem:[#allocation5 + $0x24] sm:$0xf]
    %v72 = vld [vmem:[#allocation5 + $0x28] sm:$0xf]
    %v73 = vld [vmem:[#allocation5 + $0x2c] sm:$0xf]
    %v74 = vld [vmem:[#allocation5 + $0x30] sm:$0xf]
    %v75 = vld [vmem:[#allocation5 + $0x34] sm:$0xf]
    %v76 = vld [vmem:[#allocation5 + $0x38] sm:$0xf]
    %v77 = vld [vmem:[#allocation5 + $0x3c] sm:$0xf]
    %v94 = vunpack.c.l.b16 %v62
    %v95 = vunpack.c.l.b16 %v63
    %v96 = vunpack.c.l.b16 %v64
    %v97 = vunpack.c.l.b16 %v65
    %v98 = vunpack.c.l.b16 %v66
    %v99 = vunpack.c.l.b16 %v67
    %v100 = vunpack.c.l.b16 %v68
    %v101 = vunpack.c.l.b16 %v69
    %v102 = vunpack.c.l.b16 %v70
    %v103 = vunpack.c.l.b16 %v71
    %v104 = vunpack.c.l.b16 %v72
    %v105 = vunpack.c.l.b16 %v73
    %v106 = vunpack.c.l.b16 %v74
    %v107 = vunpack.c.l.b16 %v75
    %v108 = vunpack.c.l.b16 %v76
    %v109 = vunpack.c.l.b16 %v77
    %v110 = vpack.c.b16 %v95, %v94
    %v111 = vpack.c.b16 %v97, %v96
    %v112 = vpack.c.b16 %v99, %v98
    %v113 = vpack.c.b16 %v101, %v100
    %v114 = vpack.c.b16 %v103, %v102
    %v115 = vpack.c.b16 %v105, %v104
    %v116 = vpack.c.b16 %v107, %v106
    %v117 = vpack.c.b16 %v109, %v108
    %126 = vmatprep.subr.bf16.mxu0 0
    %127 = vmatpush1.bf16.msra.mxu0 %v117
    %128 = vmatprep.subr.bf16.mxu0 0
    %129 = vmatpush1.bf16.msra.mxu0 %v116
    %130 = vmatprep.subr.bf16.mxu0 0
    %131 = vmatpush1.bf16.msra.mxu0 %v115
    %132 = vmatprep.subr.bf16.mxu0 0
    %133 = vmatpush1.bf16.msra.mxu0 %v114
    %134 = vmatprep.subr.bf16.mxu0 0
    %135 = vmatpush1.bf16.msra.mxu0 %v113
    %136 = vmatprep.subr.bf16.mxu0 0
    %137 = vmatpush1.bf16.msra.mxu0 %v112
    %138 = vmatprep.subr.bf16.mxu0 0
    %139 = vmatpush1.bf16.msra.mxu0 %v111
    %140 = vmatprep.subr.bf16.mxu0 0
    %141 = vmatpush1.bf16.msra.mxu0 %v110
    %142 = vmatprep.subr.bf16.mxu0 0
    %143 = vmatpush2.bf16.msra.mxu0 0
    %144 = vmatprep.subr.bf16.mxu0 0
    %145 = vmatpush2.bf16.msra.mxu0 0
    %146 = vmatprep.subr.bf16.mxu0 0
    %147 = vmatpush2.bf16.msra.mxu0 0
    %148 = vmatprep.subr.bf16.mxu0 0
    %149 = vmatpush2.bf16.msra.mxu0 0
    %150 = vmatprep.subr.bf16.mxu0 0
    %151 = vmatpush2.bf16.msra.mxu0 0
    %152 = vmatprep.subr.bf16.mxu0 0
    %153 = vmatpush2.bf16.msra.mxu0 0
    %154 = vmatprep.subr.bf16.mxu0 0
    %155 = vmatpush2.bf16.msra.mxu0 0
    %156 = vmatprep.subr.bf16.mxu0 0
    %157 = vmatpush2.bf16.msra.mxu0 0
    %158 = vmatprep.mubr.bf16.mxu0 0
    %159 = vmatmul.mubr.bf16.gmra.mxu0 %v61
    %v160 = vpop.f32.mrf.mxu0
    %v161 = vadd.f32 0.0, %v160
    %v162 = vpop.f32.mrf.mxu0
    %v163 = vpop.f32.mrf.mxu0
    %v164 = vpop.f32.mrf.mxu0
    %165 = vdwg.mxu0
    %v166 = vrot.slane %v161, 4
    %v167 = vadd.f32 %v161, %v166
    %v168 = vrot.slane %v167, 2
    %v169 = vadd.f32 %v167, %v168
    %v170 = vrot.slane %v169, 1
    %v171 = vadd.f32 %v169, %v170
    %v172 = vmul.f32 %v171, 0.125
    %v173 = vmul.f32 %v161, %v161
    %v174 = vrot.slane %v173, 4
    %v175 = vadd.f32 %v173, %v174
    %v176 = vrot.slane %v175, 2
    %v177 = vadd.f32 %v175, %v176
    %v178 = vrot.slane %v177, 1
    %v179 = vadd.f32 %v177, %v178
    %v180 = vmul.f32 %v179, 0.125
    %v181 = vmul.f32 %v172, %v172
    %v182 = vsub.f32 %v180, %v181
    %v183 = vld [vmem:[%s2] sm:$0x1]
    %v184 = vadd.f32 %v182, 1e-05
    %v185 = vrsqrt.pop %v184
    %v186 = vmul.f32 %v183, %v185
    %v187 = vld [vmem:[%s2 + $0x1] sm:$0x1]
    %v188 = vmul.f32 %v172, %v186
    %v189 = vsub.f32 %v187, %v188
    %v190 = vlaneseq
    %v191 = vshrl.u32 %v190, 7
    %v192 = vsub.s32 0, %v191
    %v193 = vrot.slane %v186, %v192
    %v194 = vmul.f32 %v161, %v193
    %v195 = vlaneseq
    %v196 = vshrl.u32 %v195, 7
    %v197 = vsub.s32 0, %v196
    %v198 = vrot.slane %v189, %v197
    %v199 = vadd.f32 %v194, %v198
    %v200 = vmax.f32 %v199, 0.0
    %v201 = vpack.c.bf16 %v200, %v200
    %v202 = vld [vmem:[#allocation7] sm:$0xf]
    %v203 = vld [vmem:[#allocation7 + $0x4] sm:$0xf]
    %v204 = vld [vmem:[#allocation7 + $0x8] sm:$0xf]
    %v205 = vld [vmem:[#allocation7 + $0xc] sm:$0xf]
    %v206 = vld [vmem:[#allocation7 + $0x10] sm:$0xf]
    %v207 = vld [vmem:[#allocation7 + $0x14] sm:$0xf]
    %v208 = vld [vmem:[#allocation7 + $0x18] sm:$0xf]
    %v209 = vld [vmem:[#allocation7 + $0x1c] sm:$0xf]
    %v210 = vld [vmem:[#allocation7 + $0x20] sm:$0xf]
    %v211 = vld [vmem:[#allocation7 + $0x24] sm:$0xf]
    %v212 = vld [vmem:[#allocation7 + $0x28] sm:$0xf]
    %v213 = vld [vmem:[#allocation7 + $0x2c] sm:$0xf]
    %v214 = vld [vmem:[#allocation7 + $0x30] sm:$0xf]
    %v215 = vld [vmem:[#allocation7 + $0x34] sm:$0xf]
    %v216 = vld [vmem:[#allocation7 + $0x38] sm:$0xf]
    %v217 = vld [vmem:[#allocation7 + $0x3c] sm:$0xf]
    %v234 = vunpack.c.l.b16 %v202
    %v235 = vunpack.c.l.b16 %v203
    %v236 = vunpack.c.l.b16 %v204
    %v237 = vunpack.c.l.b16 %v205
    %v238 = vunpack.c.l.b16 %v206
    %v239 = vunpack.c.l.b16 %v207
    %v240 = vunpack.c.l.b16 %v208
    %v241 = vunpack.c.l.b16 %v209
    %v242 = vunpack.c.l.b16 %v210
    %v243 = vunpack.c.l.b16 %v211
    %v244 = vunpack.c.l.b16 %v212
    %v245 = vunpack.c.l.b16 %v213
    %v246 = vunpack.c.l.b16 %v214
    %v247 = vunpack.c.l.b16 %v215
    %v248 = vunpack.c.l.b16 %v216
    %v249 = vunpack.c.l.b16 %v217
    %v250 = vpack.c.b16 %v235, %v234
    %v251 = vpack.c.b16 %v237, %v236
    %v252 = vpack.c.b16 %v239, %v238
    %v253 = vpack.c.b16 %v241, %v240
    %v254 = vpack.c.b16 %v243, %v242
    %v255 = vpack.c.b16 %v245, %v244
    %v256 = vpack.c.b16 %v247, %v246
    %v257 = vpack.c.b16 %v249, %v248
    %266 = vmatprep.subr.bf16.mxu0 0
    %267 = vmatpush1.bf16.msra.mxu0 %v257
    %268 = vmatprep.subr.bf16.mxu0 0
    %269 = vmatpush1.bf16.msra.mxu0 %v256
    %270 = vmatprep.subr.bf16.mxu0 0
    %271 = vmatpush1.bf16.msra.mxu0 %v255
    %272 = vmatprep.subr.bf16.mxu0 0
    %273 = vmatpush1.bf16.msra.mxu0 %v254
    %274 = vmatprep.subr.bf16.mxu0 0
    %275 = vmatpush1.bf16.msra.mxu0 %v253
    %276 = vmatprep.subr.bf16.mxu0 0
    %277 = vmatpush1.bf16.msra.mxu0 %v252
    %278 = vmatprep.subr.bf16.mxu0 0
    %279 = vmatpush1.bf16.msra.mxu0 %v251
    %280 = vmatprep.subr.bf16.mxu0 0
    %281 = vmatpush1.bf16.msra.mxu0 %v250
    %282 = vmatprep.subr.bf16.mxu0 0
    %283 = vmatpush2.bf16.msra.mxu0 0
    %284 = vmatprep.subr.bf16.mxu0 0
    %285 = vmatpush2.bf16.msra.mxu0 0
    %286 = vmatprep.subr.bf16.mxu0 0
    %287 = vmatpush2.bf16.msra.mxu0 0
    %288 = vmatprep.subr.bf16.mxu0 0
    %289 = vmatpush2.bf16.msra.mxu0 0
    %290 = vmatprep.subr.bf16.mxu0 0
    %291 = vmatpush2.bf16.msra.mxu0 0
    %292 = vmatprep.subr.bf16.mxu0 0
    %293 = vmatpush2.bf16.msra.mxu0 0
    %294 = vmatprep.subr.bf16.mxu0 0
    %295 = vmatpush2.bf16.msra.mxu0 0
    %296 = vmatprep.subr.bf16.mxu0 0
    %297 = vmatpush2.bf16.msra.mxu0 0
    %298 = vmatprep.mubr.bf16.mxu0 0
    %299 = vmatmul.mubr.bf16.gmra.mxu0 %v201
    %v300 = vpop.f32.mrf.mxu0
    %v301 = vadd.f32 0.0, %v300
    %v302 = vpop.f32.mrf.mxu0
    %v303 = vpop.f32.mrf.mxu0
    %v304 = vpop.f32.mrf.mxu0
    %305 = vdwg.mxu0
    %v306 = vrot.slane %v301, 4
    %v307 = vadd.f32 %v301, %v306
    %v308 = vrot.slane %v307, 2
    %v309 = vadd.f32 %v307, %v308
    %v310 = vrot.slane %v309, 1
    %v311 = vadd.f32 %v309, %v310
    %v312 = vmul.f32 %v311, 0.125
    %v313 = vmul.f32 %v301, %v301
    %v314 = vrot.slane %v313, 4
    %v315 = vadd.f32 %v313, %v314
    %v316 = vrot.slane %v315, 2
    %v317 = vadd.f32 %v315, %v316
    %v318 = vrot.slane %v317, 1
    %v319 = vadd.f32 %v317, %v318
    %v320 = vmul.f32 %v319, 0.125
    %v321 = vmul.f32 %v312, %v312
    %v322 = vsub.f32 %v320, %v321
    %v323 = vld [vmem:[%s4] sm:$0x1]
    %v324 = vadd.f32 %v322, 1e-05
    %v325 = vrsqrt.pop %v324
    %v326 = vmul.f32 %v323, %v325
    %v327 = vld [vmem:[%s4 + $0x1] sm:$0x1]
    %v328 = vmul.f32 %v312, %v326
    %v329 = vsub.f32 %v327, %v328
    %v330 = vlaneseq
    %v331 = vshrl.u32 %v330, 7
    %v332 = vsub.s32 0, %v331
    %v333 = vrot.slane %v326, %v332
    %v334 = vmul.f32 %v301, %v333
    %v335 = vlaneseq
    %v336 = vshrl.u32 %v335, 7
    %v337 = vsub.s32 0, %v336
    %v338 = vrot.slane %v329, %v337
    %v339 = vadd.f32 %v334, %v338
    %340 = vst [vmem:[#allocation8] sm:$0xff] %v339
    // Predicated region
    $region34: #{tpu_custom_call.1} parent=1 // pred_check
      _
    $region35: #{tpu_custom_call.1} parent=1 // pred_check_branch
      %342 = sbr.rel (0) target = $region37
    $region36: #{tpu_custom_call.1} parent=1 // pred_region
      %s344 = ssub.s32 128, 128
      %345 = vsyncadd [#allocation4], %s344
      %s347 = sshll.u32 [#allocation8], 4
      %s348 = int_to_ptr.vmem [resolvable:$true] %s347
      %350 = dma.vmem_to_hbm [thread:$0]  %s348, 128, %s5, [#allocation4]
    $region37: #{tpu_custom_call.1} parent=1 // pred_fallthru
      _
    // Predicated region
    $region38: #{tpu_custom_call.1} parent=1 // pred_check
      _
    $region39: #{tpu_custom_call.1} parent=1 // pred_check_branch
      %352 = sbr.rel (0) target = $region41
    $region40: #{tpu_custom_call.1} parent=1 // pred_region
      %353 = dma.done [#allocation4], 128
    $region41: #{tpu_custom_call.1} parent=1 // pred_fallthru
      _
    %354 = vsyncpa [#allocation3], 1
    %355 = vsyncpa [#allocation6], 1
    %356 = vsyncpa [#allocation4], 1

</llo_original>
